<compile_context>
chip_gen: v6e
topology: v6e:2x2x1
jax: 0.10.0
libtpu: 0.0.40
codegen_flags: <defaults>
</compile_context>

<pallas_src>
import functools

import jax
import jax.numpy as jnp
import numpy as np
from jax.experimental import pallas as pl
from jax.experimental.pallas import tpu as pltpu


def twobody_kernel(feat_ref, wq_ref, bq_ref, wkvg_ref, bkvg_ref,
                   gamma_ref, beta_ref, out_ref, q_scr, va_scr, *,
                   num_heads, head_dim, tile_j, eps, compute_dtype):
    f32 = jnp.float32
    nh, D = num_heads, head_dim
    H = nh * D
    j = pl.program_id(0)

    @pl.when(j == 0)
    def _init():
        # Q projection for all rows, once; head_dim**-0.5 pre-folded into wq/bq.
        q = jnp.dot(feat_ref[...], wq_ref[...],
                    preferred_element_type=f32) + bq_ref[...]
        q_scr[...] = jnp.stack(
            [q[:, h * D:(h + 1) * D] for h in range(nh)], axis=0
        ).astype(q_scr.dtype)                                  # (nh, N, D)
        va_scr[...] = jnp.zeros_like(va_scr)

    # Fused K|V|G projection for this key tile: one wide MXU pass + one bias add.
    start = pl.multiple_of(j * tile_j, tile_j)
    feat_j = feat_ref[pl.ds(start, tile_j), :]
    kvg = jnp.dot(feat_j, wkvg_ref[...],
                  preferred_element_type=f32) + bkvg_ref[...]   # (tj, 2H+nh)

    k3 = jnp.stack([kvg[:, h * D:(h + 1) * D] for h in range(nh)], axis=0)
    sig_g = jax.nn.sigmoid(kvg[:, 2 * H:])                      # (tj, nh)
    # Fold the sigmoid gate into V rows: (tj, D) multiply per head instead of
    # an N x N gate multiply (and no gates transpose).
    v3 = jnp.stack([kvg[:, H + h * D:H + (h + 1) * D] * sig_g[:, h:h + 1]
                    for h in range(nh)], axis=0)                # (nh, tj, D)

    # Batched-over-heads Q.K^T.  E term omitted: constant along the softmax
    # axis (i) => cancels exactly.
    s = jnp.einsum('hid,hjd->hij', q_scr[...], k3.astype(compute_dtype),
                   preferred_element_type=f32)                  # (nh, N, tj)

    # softmax over i (axis 1) — complete within this key tile.
    m = jnp.max(s, axis=1, keepdims=True)
    ex = jnp.exp(s - m)
    denom = jnp.sum(ex, axis=1, keepdims=True)                  # (nh, 1, tj)
    # Exact reciprocal keeps 1e-4 parity; set approx=True if tolerance allows.
    p = ex * pl.reciprocal(denom, approx=False)

    va_scr[...] += jnp.einsum('hij,hjd->hid', p.astype(compute_dtype),
                              v3.astype(compute_dtype),
                              preferred_element_type=f32)       # (nh, N, D)

    @pl.when(j == pl.num_programs(0) - 1)
    def _finalize():
        # Assemble lane-dense (N, H), LayerNorm, single full-width store.
        va = jnp.concatenate([va_scr[h] for h in range(nh)], axis=-1)
        mean = jnp.mean(va, axis=-1, keepdims=True)
        var = jnp.mean((va - mean) ** 2, axis=-1, keepdims=True)
        normed = (va - mean) * jax.lax.rsqrt(var + eps)
        out_ref[...] = (normed * gamma_ref[...] + beta_ref[...]).astype(out_ref.dtype)
        # TODO(synk): torch.isnan(...).any() + raise ValueError is host-side
        # control flow with no clean in-kernel equivalent; omitted.


def _pick_key_tile(n, target=512):
    """Largest key tile <= target dividing n (multiple of 8 when actually tiling)."""
    if n <= target:
        return n
    for t in range(target - target % 8, 7, -8):
        if n % t == 0:
            return t
    return n  # no nice divisor -> single tile (still correct)


def two_body_attn(feat, params, num_heads, *, compute_dtype=jnp.float32,
                  head_major_output=False, key_tile=None):
    N, H = feat.shape
    D = H // num_heads
    eps = 1e-3                      # nn.LayerNorm(eps=0.001)
    scale = D ** -0.5

    # kernel column k = h*D + d  <->  PyTorch flattened column j = d*nh + h
    perm = np.arange(H).reshape(D, num_heads).T.reshape(-1)   # perm[k] = j
    inv = np.argsort(perm)                                    # inv[j] = k

    # Q scale folded into weights; per-head columns made contiguous (head-major).
    wq = params['wq'][:, perm] * scale
    bq = (params['bq'][perm] * scale)[None, :]
    # Fused K|V|G projection.  we/be intentionally dropped (E cancels in the
    # softmax over i).
    w_kvg = jnp.concatenate([params['wk'][:, perm], params['wv'][:, perm],
                             params['wg']], axis=1)           # (H, 2H+nh)
    b_kvg = jnp.concatenate([params['bk'][perm], params['bv'][perm],
                             params['bg']])[None, :]
    gamma = params['gamma'][perm][None, :]
    beta = params['beta'][perm][None, :]

    tj = key_tile if key_tile is not None else _pick_key_tile(N)
    assert N % tj == 0, "key tile must divide N"
    nj = N // tj
    Wk = 2 * H + num_heads

    kernel = functools.partial(twobody_kernel, num_heads=num_heads, head_dim=D,
                               tile_j=tj, eps=eps, compute_dtype=compute_dtype)
    const = lambda j: (0, 0)   # resident blocks: same block index every step

    out = pl.pallas_call(
        kernel,
        out_shape=jax.ShapeDtypeStruct((N, H), jnp.float32),
        grid_spec=pltpu.PrefetchScalarGridSpec(
            num_scalar_prefetch=0,
            grid=(nj,),
            in_specs=[pl.BlockSpec((N, H), const),     # feat (resident)
                      pl.BlockSpec((H, H), const),     # wq (pre-scaled)
                      pl.BlockSpec((1, H), const),     # bq
                      pl.BlockSpec((H, Wk), const),    # [wk|wv|wg] fused
                      pl.BlockSpec((1, Wk), const),    # [bk|bv|bg] fused
                      pl.BlockSpec((1, H), const),     # LN gamma
                      pl.BlockSpec((1, H), const)],    # LN beta
            out_specs=pl.BlockSpec((N, H), const),     # written at last step only
            scratch_shapes=[pltpu.VMEM((num_heads, N, D), compute_dtype),  # Q
                            pltpu.VMEM((num_heads, N, D), jnp.float32)]),  # Va acc
        compiler_params=pltpu.CompilerParams(
            dimension_semantics=("arbitrary",),        # key axis = accumulation
            vmem_limit_bytes=64 * 1024 * 1024),
    )(feat, wq, bq, w_kvg, b_kvg, gamma, beta)

    if head_major_output:
        return out              # consumer folds `perm` into its own weights
    return out[:, inv]          # back to PyTorch's (d, h)-flattened column order


def ref_forward(feat, params, num_heads):
    """Pure-JAX reference reproducing the PyTorch forward exactly (incl. E)."""
    N, H = feat.shape
    D = H // num_heads
    Q = feat @ params['wq'] + params['bq']
    K = feat @ params['wk'] + params['bk']
    V = feat @ params['wv'] + params['bv']
    E = feat @ params['we'] + params['be']
    G = feat @ params['wg'] + params['bg']
    Q = Q.reshape(N, D, num_heads) * (D ** -0.5)
    K = K.reshape(N, D, num_heads)
    V = V.reshape(N, D, num_heads)
    Hm = jnp.einsum('idh,jdh->ijh', Q, K) + E        # E broadcasts over i
    A = jax.nn.softmax(Hm, axis=0) * jax.nn.sigmoid(G)
    Va = jnp.einsum('ijh,jdh->idh', A, V).reshape(N, H)
    mean = Va.mean(-1, keepdims=True)
    var = ((Va - mean) ** 2).mean(-1, keepdims=True)
    return (Va - mean) / jnp.sqrt(var + 1e-3) * params['gamma'] + params['beta']


if __name__ == "__main__":
    N, H, num_heads = 8, 32, 4   # seq=8, hidden=32, 4 heads -> head_dim=8

    key = jax.random.PRNGKey(0)
    ks = jax.random.split(key, 12)

    def xavier(k, shape):
        fan_in, fan_out = shape
        lim = (6.0 / (fan_in + fan_out)) ** 0.5
        return jax.random.uniform(k, shape, jnp.float32, -lim, lim)

    params = dict(
        wq=xavier(ks[0], (H, H)),         bq=0.01 * jax.random.normal(ks[1], (H,), jnp.float32),
        wk=xavier(ks[2], (H, H)),         bk=0.01 * jax.random.normal(ks[3], (H,), jnp.float32),
        wv=xavier(ks[4], (H, H)),         bv=0.01 * jax.random.normal(ks[5], (H,), jnp.float32),
        we=xavier(ks[6], (H, num_heads)), be=0.01 * jax.random.normal(ks[7], (num_heads,), jnp.float32),
        wg=xavier(ks[8], (H, num_heads)), bg=0.01 * jax.random.normal(ks[9], (num_heads,), jnp.float32),
        gamma=1.0 + 0.1 * jax.random.normal(ks[10], (H,), jnp.float32),
        beta=0.1 * jax.random.normal(ks[11], (H,), jnp.float32),
    )

    feat = jax.random.normal(jax.random.PRNGKey(42), (N, H), jnp.float32)

    out = two_body_attn(feat, params, num_heads)
    out = jax.block_until_ready(out)

    ref = ref_forward(feat, params, num_heads)
    np.testing.assert_allclose(np.asarray(out), np.asarray(ref),
                               rtol=1e-4, atol=1e-4)
    print("KERNEL_OK")
</pallas_src>

<mosaic_0001>
module attributes {stable_mosaic.version = 11 : i64} {
  func.func @twobody_kernel(%arg0: i32, %arg1: memref<8x32xf32, #tpu.memory_space<vmem>>, %arg2: memref<32x32xf32, #tpu.memory_space<vmem>>, %arg3: memref<1x32xf32, #tpu.memory_space<vmem>>, %arg4: memref<32x68xf32, #tpu.memory_space<vmem>>, %arg5: memref<1x68xf32, #tpu.memory_space<vmem>>, %arg6: memref<1x32xf32, #tpu.memory_space<vmem>>, %arg7: memref<1x32xf32, #tpu.memory_space<vmem>>, %arg8: memref<8x32xf32, #tpu.memory_space<vmem>>, %arg9: memref<4x8x8xf32, #tpu.memory_space<vmem>>, %arg10: memref<4x8x8xf32, #tpu.memory_space<vmem>>) attributes {dimension_semantics = [#tpu.dimension_semantics<arbitrary>], iteration_bounds = array<i64: 1>, scalar_prefetch = 0 : i64, scratch_operands = 2 : i64, tpu.core_type = #tpu.core_type<tc>, window_params = [{pipeline_mode = #tpu.pipeline_mode<synchronous>, transform_indices = @transform_0, window_bounds = array<i64: 8, 32>}, {pipeline_mode = #tpu.pipeline_mode<synchronous>, transform_indices = @transform_1, window_bounds = array<i64: 32, 32>}, {pipeline_mode = #tpu.pipeline_mode<synchronous>, transform_indices = @transform_2, window_bounds = array<i64: 1, 32>}, {pipeline_mode = #tpu.pipeline_mode<synchronous>, transform_indices = @transform_3, window_bounds = array<i64: 32, 68>}, {pipeline_mode = #tpu.pipeline_mode<synchronous>, transform_indices = @transform_4, window_bounds = array<i64: 1, 68>}, {pipeline_mode = #tpu.pipeline_mode<synchronous>, transform_indices = @transform_5, window_bounds = array<i64: 1, 32>}, {pipeline_mode = #tpu.pipeline_mode<synchronous>, transform_indices = @transform_6, window_bounds = array<i64: 1, 32>}, {pipeline_mode = #tpu.pipeline_mode<synchronous>, transform_indices = @transform_7, window_bounds = array<i64: 8, 32>}]} {
    %c0_i32 = arith.constant 0 : i32
    %0 = arith.cmpi eq, %arg0, %c0_i32 : i32
    %1 = arith.extui %0 : i1 to i32
    %c0_i32_0 = arith.constant 0 : i32
    %2 = arith.cmpi ne, %1, %c0_i32_0 : i32
    scf.if %2 {
      %c0_21 = arith.constant 0 : index
      %c0_22 = arith.constant 0 : index
      %67 = vector.load %arg1[%c0_21, %c0_22] : memref<8x32xf32, #tpu.memory_space<vmem>>, vector<8x32xf32>
      %c0_23 = arith.constant 0 : index
      %c0_24 = arith.constant 0 : index
      %68 = vector.load %arg2[%c0_23, %c0_24] : memref<32x32xf32, #tpu.memory_space<vmem>>, vector<32x32xf32>
      %cst_25 = arith.constant dense<0.000000e+00> : vector<8x32xf32>
      %69 = tpu.matmul %67, %68, %cst_25 {dimension_numbers = #tpu.dot_dimension_numbers<[1], [0], [0], [1], [0, 0, 1, 1], [], []>} : vector<8x32xf32>, vector<32x32xf32>, vector<8x32xf32> -> vector<8x32xf32>
      %c0_26 = arith.constant 0 : index
      %c0_27 = arith.constant 0 : index
      %70 = vector.load %arg3[%c0_26, %c0_27] : memref<1x32xf32, #tpu.memory_space<vmem>>, vector<1x32xf32>
      %71 = vector.broadcast %70 : vector<1x32xf32> to vector<8x32xf32>
      %72 = arith.addf %69, %71 : vector<8x32xf32>
      %73 = vector.extract_strided_slice %72 {offsets = [0, 0], sizes = [8, 8], strides = [1, 1]} : vector<8x32xf32> to vector<8x8xf32>
      %74 = vector.extract_strided_slice %72 {offsets = [0, 8], sizes = [8, 8], strides = [1, 1]} : vector<8x32xf32> to vector<8x8xf32>
      %75 = vector.extract_strided_slice %72 {offsets = [0, 16], sizes = [8, 8], strides = [1, 1]} : vector<8x32xf32> to vector<8x8xf32>
      %76 = vector.extract_strided_slice %72 {offsets = [0, 24], sizes = [8, 8], strides = [1, 1]} : vector<8x32xf32> to vector<8x8xf32>
      %77 = vector.shape_cast %73 : vector<8x8xf32> to vector<1x8x8xf32>
      %78 = vector.shape_cast %74 : vector<8x8xf32> to vector<1x8x8xf32>
      %79 = vector.shape_cast %75 : vector<8x8xf32> to vector<1x8x8xf32>
      %80 = vector.shape_cast %76 : vector<8x8xf32> to vector<1x8x8xf32>
      %81 = tpu.concatenate %77, %78, %79, %80 in 0 : vector<1x8x8xf32>, vector<1x8x8xf32>, vector<1x8x8xf32>, vector<1x8x8xf32> -> vector<4x8x8xf32>
      %c0_28 = arith.constant 0 : index
      %c0_29 = arith.constant 0 : index
      %c0_30 = arith.constant 0 : index
      %82 = vector.load %arg9[%c0_28, %c0_29, %c0_30] : memref<4x8x8xf32, #tpu.memory_space<vmem>>, vector<4x8x8xf32>
      tpu.vector_store %arg9[%c0_28, %c0_29, %c0_30], %81 {strides = array<i32>} : memref<4x8x8xf32, #tpu.memory_space<vmem>>, vector<4x8x8xf32>,
      %cst_31 = arith.constant 0.000000e+00 : f32
      %83 = vector.broadcast %cst_31 : f32 to vector<4x8x8xf32>
      %c0_32 = arith.constant 0 : index
      %c0_33 = arith.constant 0 : index
      %c0_34 = arith.constant 0 : index
      %84 = vector.load %arg10[%c0_32, %c0_33, %c0_34] : memref<4x8x8xf32, #tpu.memory_space<vmem>>, vector<4x8x8xf32>
      tpu.vector_store %arg10[%c0_32, %c0_33, %c0_34], %83 {strides = array<i32>} : memref<4x8x8xf32, #tpu.memory_space<vmem>>, vector<4x8x8xf32>,
    } else {
    }
    %c8_i32 = arith.constant 8 : i32
    %3 = arith.muli %arg0, %c8_i32 : i32
    %4 = tpu.assume_multiple %3, 8 : i32
    %5 = arith.index_cast %4 : i32 to index
    %c0 = arith.constant 0 : index
    %6 = vector.load %arg1[%5, %c0] : memref<8x32xf32, #tpu.memory_space<vmem>>, vector<8x32xf32>
    %c0_1 = arith.constant 0 : index
    %c0_2 = arith.constant 0 : index
    %7 = vector.load %arg4[%c0_1, %c0_2] : memref<32x68xf32, #tpu.memory_space<vmem>>, vector<32x68xf32>
    %cst = arith.constant dense<0.000000e+00> : vector<8x68xf32>
    %8 = tpu.matmul %6, %7, %cst {dimension_numbers = #tpu.dot_dimension_numbers<[1], [0], [0], [1], [0, 0, 1, 1], [], []>} : vector<8x32xf32>, vector<32x68xf32>, vector<8x68xf32> -> vector<8x68xf32>
    %c0_3 = arith.constant 0 : index
    %c0_4 = arith.constant 0 : index
    %9 = vector.load %arg5[%c0_3, %c0_4] : memref<1x68xf32, #tpu.memory_space<vmem>>, vector<1x68xf32>
    %10 = vector.broadcast %9 : vector<1x68xf32> to vector<8x68xf32>
    %11 = arith.addf %8, %10 : vector<8x68xf32>
    %12 = vector.extract_strided_slice %11 {offsets = [0, 0], sizes = [8, 8], strides = [1, 1]} : vector<8x68xf32> to vector<8x8xf32>
    %13 = vector.extract_strided_slice %11 {offsets = [0, 8], sizes = [8, 8], strides = [1, 1]} : vector<8x68xf32> to vector<8x8xf32>
    %14 = vector.extract_strided_slice %11 {offsets = [0, 16], sizes = [8, 8], strides = [1, 1]} : vector<8x68xf32> to vector<8x8xf32>
    %15 = vector.extract_strided_slice %11 {offsets = [0, 24], sizes = [8, 8], strides = [1, 1]} : vector<8x68xf32> to vector<8x8xf32>
    %16 = vector.shape_cast %12 : vector<8x8xf32> to vector<1x8x8xf32>
    %17 = vector.shape_cast %13 : vector<8x8xf32> to vector<1x8x8xf32>
    %18 = vector.shape_cast %14 : vector<8x8xf32> to vector<1x8x8xf32>
    %19 = vector.shape_cast %15 : vector<8x8xf32> to vector<1x8x8xf32>
    %20 = tpu.concatenate %16, %17, %18, %19 in 0 : vector<1x8x8xf32>, vector<1x8x8xf32>, vector<1x8x8xf32>, vector<1x8x8xf32> -> vector<4x8x8xf32>
    %21 = vector.extract_strided_slice %11 {offsets = [0, 64], sizes = [8, 4], strides = [1, 1]} : vector<8x68xf32> to vector<8x4xf32>
    %22 = arith.negf %21 : vector<8x4xf32>
    %23 = math.exp %22 : vector<8x4xf32>
    %cst_5 = arith.constant 1.000000e+00 : f32
    %24 = vector.broadcast %cst_5 : f32 to vector<8x4xf32>
    %25 = arith.addf %24, %23 : vector<8x4xf32>
    %26 = arith.divf %24, %25 : vector<8x4xf32>
    %27 = vector.extract_strided_slice %11 {offsets = [0, 32], sizes = [8, 8], strides = [1, 1]} : vector<8x68xf32> to vector<8x8xf32>
    %28 = vector.extract_strided_slice %26 {offsets = [0, 0], sizes = [8, 1], strides = [1, 1]} : vector<8x4xf32> to vector<8x1xf32>
    %29 = vector.broadcast %28 : vector<8x1xf32> to vector<8x8xf32>
    %30 = arith.mulf %27, %29 : vector<8x8xf32>
    %31 = vector.extract_strided_slice %11 {offsets = [0, 40], sizes = [8, 8], strides = [1, 1]} : vector<8x68xf32> to vector<8x8xf32>
    %32 = vector.extract_strided_slice %26 {offsets = [0, 1], sizes = [8, 1], strides = [1, 1]} : vector<8x4xf32> to vector<8x1xf32>
    %33 = vector.broadcast %32 : vector<8x1xf32> to vector<8x8xf32>
    %34 = arith.mulf %31, %33 : vector<8x8xf32>
    %35 = vector.extract_strided_slice %11 {offsets = [0, 48], sizes = [8, 8], strides = [1, 1]} : vector<8x68xf32> to vector<8x8xf32>
    %36 = vector.extract_strided_slice %26 {offsets = [0, 2], sizes = [8, 1], strides = [1, 1]} : vector<8x4xf32> to vector<8x1xf32>
    %37 = vector.broadcast %36 : vector<8x1xf32> to vector<8x8xf32>
    %38 = arith.mulf %35, %37 : vector<8x8xf32>
    %39 = vector.extract_strided_slice %11 {offsets = [0, 56], sizes = [8, 8], strides = [1, 1]} : vector<8x68xf32> to vector<8x8xf32>
    %40 = vector.extract_strided_slice %26 {offsets = [0, 3], sizes = [8, 1], strides = [1, 1]} : vector<8x4xf32> to vector<8x1xf32>
    %41 = vector.broadcast %40 : vector<8x1xf32> to vector<8x8xf32>
    %42 = arith.mulf %39, %41 : vector<8x8xf32>
    %43 = vector.shape_cast %30 : vector<8x8xf32> to vector<1x8x8xf32>
    %44 = vector.shape_cast %34 : vector<8x8xf32> to vector<1x8x8xf32>
    %45 = vector.shape_cast %38 : vector<8x8xf32> to vector<1x8x8xf32>
    %46 = vector.shape_cast %42 : vector<8x8xf32> to vector<1x8x8xf32>
    %47 = tpu.concatenate %43, %44, %45, %46 in 0 : vector<1x8x8xf32>, vector<1x8x8xf32>, vector<1x8x8xf32>, vector<1x8x8xf32> -> vector<4x8x8xf32>
    %c0_6 = arith.constant 0 : index
    %c0_7 = arith.constant 0 : index
    %c0_8 = arith.constant 0 : index
    %48 = vector.load %arg9[%c0_6, %c0_7, %c0_8] : memref<4x8x8xf32, #tpu.memory_space<vmem>>, vector<4x8x8xf32>
    "tpu.trace_start"() <{level = 10 : i32, message = "hid,hjd->hij"}> : () -> ()
    %cst_9 = arith.constant dense<0.000000e+00> : vector<4x8x8xf32>
    %49 = tpu.matmul %48, %20, %cst_9 {dimension_numbers = #tpu.dot_dimension_numbers<[2], [2], [1], [1], [0, 0, 0, 1, 1, 1], [0], [0]>} : vector<4x8x8xf32>, vector<4x8x8xf32>, vector<4x8x8xf32> -> vector<4x8x8xf32>
    "tpu.trace_stop"() : () -> ()
    %cst_10 = arith.constant dense<0xFF800000> : vector<4x8xf32>
    %50 = vector.multi_reduction <maximumf>, %49, %cst_10 [1] : vector<4x8x8xf32> to vector<4x8xf32>
    %51 = vector.shape_cast %50 : vector<4x8xf32> to vector<4x1x8xf32>
    %52 = vector.broadcast %51 : vector<4x1x8xf32> to vector<4x8x8xf32>
    %53 = arith.subf %49, %52 : vector<4x8x8xf32>
    %54 = math.exp %53 : vector<4x8x8xf32>
    %cst_11 = arith.constant dense<0.000000e+00> : vector<4x8xf32>
    %55 = vector.multi_reduction <add>, %54, %cst_11 [1] : vector<4x8x8xf32> to vector<4x8xf32>
    %56 = vector.shape_cast %55 : vector<4x8xf32> to vector<4x1x8xf32>
    %57 = tpu.reciprocal %56 : vector<4x1x8xf32> -> vector<4x1x8xf32>
    %58 = vector.broadcast %57 : vector<4x1x8xf32> to vector<4x8x8xf32>
    %59 = arith.mulf %54, %58 : vector<4x8x8xf32>
    %c0_12 = arith.constant 0 : index
    %c0_13 = arith.constant 0 : index
    %c0_14 = arith.constant 0 : index
    %60 = vector.load %arg10[%c0_12, %c0_13, %c0_14] : memref<4x8x8xf32, #tpu.memory_space<vmem>>, vector<4x8x8xf32>
    "tpu.trace_start"() <{level = 10 : i32, message = "hij,hjd->hid"}> : () -> ()
    %cst_15 = arith.constant dense<0.000000e+00> : vector<4x8x8xf32>
    %61 = tpu.matmul %59, %47, %cst_15 {dimension_numbers = #tpu.dot_dimension_numbers<[2], [1], [1], [2], [0, 0, 0, 1, 1, 2], [0], [0]>} : vector<4x8x8xf32>, vector<4x8x8xf32>, vector<4x8x8xf32> -> vector<4x8x8xf32>
    "tpu.trace_stop"() : () -> ()
    %62 = arith.addf %60, %61 : vector<4x8x8xf32>
    %c0_16 = arith.constant 0 : index
    %c0_17 = arith.constant 0 : index
    %c0_18 = arith.constant 0 : index
    %63 = vector.load %arg10[%c0_16, %c0_17, %c0_18] : memref<4x8x8xf32, #tpu.memory_space<vmem>>, vector<4x8x8xf32>
    tpu.vector_store %arg10[%c0_16, %c0_17, %c0_18], %62 {strides = array<i32>} : memref<4x8x8xf32, #tpu.memory_space<vmem>>, vector<4x8x8xf32>,
    %c0_i32_19 = arith.constant 0 : i32
    %64 = arith.cmpi eq, %arg0, %c0_i32_19 : i32
    %65 = arith.extui %64 : i1 to i32
    %c0_i32_20 = arith.constant 0 : i32
    %66 = arith.cmpi ne, %65, %c0_i32_20 : i32
    scf.if %66 {
      %c0_21 = arith.constant 0 : index
      %c0_22 = arith.constant 0 : index
      %c0_23 = arith.constant 0 : index
      %67 = vector.load %arg10[%c0_21, %c0_22, %c0_23] : memref<4x8x8xf32, #tpu.memory_space<vmem>>, vector<1x8x8xf32>
      %68 = vector.shape_cast %67 : vector<1x8x8xf32> to vector<8x8xf32>
      %c1 = arith.constant 1 : index
      %c0_24 = arith.constant 0 : index
      %c0_25 = arith.constant 0 : index
      %69 = vector.load %arg10[%c1, %c0_24, %c0_25] : memref<4x8x8xf32, #tpu.memory_space<vmem>>, vector<1x8x8xf32>
      %70 = vector.shape_cast %69 : vector<1x8x8xf32> to vector<8x8xf32>
      %c2 = arith.constant 2 : index
      %c0_26 = arith.constant 0 : index
      %c0_27 = arith.constant 0 : index
      %71 = vector.load %arg10[%c2, %c0_26, %c0_27] : memref<4x8x8xf32, #tpu.memory_space<vmem>>, vector<1x8x8xf32>
      %72 = vector.shape_cast %71 : vector<1x8x8xf32> to vector<8x8xf32>
      %c3 = arith.constant 3 : index
      %c0_28 = arith.constant 0 : index
      %c0_29 = arith.constant 0 : index
      %73 = vector.load %arg10[%c3, %c0_28, %c0_29] : memref<4x8x8xf32, #tpu.memory_space<vmem>>, vector<1x8x8xf32>
      %74 = vector.shape_cast %73 : vector<1x8x8xf32> to vector<8x8xf32>
      %75 = tpu.concatenate %68, %70, %72, %74 in 1 : vector<8x8xf32>, vector<8x8xf32>, vector<8x8xf32>, vector<8x8xf32> -> vector<8x32xf32>
      %cst_30 = arith.constant dense<0.000000e+00> : vector<8xf32>
      %76 = vector.multi_reduction <add>, %75, %cst_30 [1] : vector<8x32xf32> to vector<8xf32>
      %77 = vector.shape_cast %76 : vector<8xf32> to vector<8x1xf32>
      %cst_31 = arith.constant 3.200000e+01 : f32
      %78 = vector.broadcast %cst_31 : f32 to vector<8x1xf32>
      %79 = arith.divf %77, %78 : vector<8x1xf32>
      %80 = vector.broadcast %79 : vector<8x1xf32> to vector<8x32xf32>
      %81 = arith.subf %75, %80 : vector<8x32xf32>
      %82 = arith.mulf %81, %81 : vector<8x32xf32>
      %cst_32 = arith.constant dense<0.000000e+00> : vector<8xf32>
      %83 = vector.multi_reduction <add>, %82, %cst_32 [1] : vector<8x32xf32> to vector<8xf32>
      %84 = vector.shape_cast %83 : vector<8xf32> to vector<8x1xf32>
      %cst_33 = arith.constant 3.200000e+01 : f32
      %85 = vector.broadcast %cst_33 : f32 to vector<8x1xf32>
      %86 = arith.divf %84, %85 : vector<8x1xf32>
      %87 = vector.broadcast %79 : vector<8x1xf32> to vector<8x32xf32>
      %88 = arith.subf %75, %87 : vector<8x32xf32>
      %cst_34 = arith.constant 1.000000e-03 : f32
      %89 = vector.broadcast %cst_34 : f32 to vector<8x1xf32>
      %90 = arith.addf %86, %89 : vector<8x1xf32>
      %91 = math.rsqrt %90 : vector<8x1xf32>
      %92 = vector.broadcast %91 : vector<8x1xf32> to vector<8x32xf32>
      %93 = arith.mulf %88, %92 : vector<8x32xf32>
      %c0_35 = arith.constant 0 : index
      %c0_36 = arith.constant 0 : index
      %94 = vector.load %arg6[%c0_35, %c0_36] : memref<1x32xf32, #tpu.memory_space<vmem>>, vector<1x32xf32>
      %95 = vector.broadcast %94 : vector<1x32xf32> to vector<8x32xf32>
      %96 = arith.mulf %93, %95 : vector<8x32xf32>
      %c0_37 = arith.constant 0 : index
      %c0_38 = arith.constant 0 : index
      %97 = vector.load %arg7[%c0_37, %c0_38] : memref<1x32xf32, #tpu.memory_space<vmem>>, vector<1x32xf32>
      %98 = vector.broadcast %97 : vector<1x32xf32> to vector<8x32xf32>
      %99 = arith.addf %96, %98 : vector<8x32xf32>
      %c0_39 = arith.constant 0 : index
      %c0_40 = arith.constant 0 : index
      %100 = vector.load %arg8[%c0_39, %c0_40] : memref<8x32xf32, #tpu.memory_space<vmem>>, vector<8x32xf32>
      tpu.vector_store %arg8[%c0_39, %c0_40], %99 {strides = array<i32>} : memref<8x32xf32, #tpu.memory_space<vmem>>, vector<8x32xf32>,
    } else {
    }
    return
  }
  func.func @transform_0(%arg0: i32) -> (i32, i32) {
    %c0_i32 = arith.constant 0 : i32
    %c0_i32_0 = arith.constant 0 : i32
    %c0_i32_1 = arith.constant 0 : i32
    return %c0_i32, %c0_i32_0 : i32, i32
  }
  func.func @transform_1(%arg0: i32) -> (i32, i32) {
    %c0_i32 = arith.constant 0 : i32
    %c0_i32_0 = arith.constant 0 : i32
    %c0_i32_1 = arith.constant 0 : i32
    return %c0_i32, %c0_i32_0 : i32, i32
  }
  func.func @transform_2(%arg0: i32) -> (i32, i32) {
    %c0_i32 = arith.constant 0 : i32
    %c0_i32_0 = arith.constant 0 : i32
    %c0_i32_1 = arith.constant 0 : i32
    return %c0_i32, %c0_i32_0 : i32, i32
  }
  func.func @transform_3(%arg0: i32) -> (i32, i32) {
    %c0_i32 = arith.constant 0 : i32
    %c0_i32_0 = arith.constant 0 : i32
    %c0_i32_1 = arith.constant 0 : i32
    return %c0_i32, %c0_i32_0 : i32, i32
  }
  func.func @transform_4(%arg0: i32) -> (i32, i32) {
    %c0_i32 = arith.constant 0 : i32
    %c0_i32_0 = arith.constant 0 : i32
    %c0_i32_1 = arith.constant 0 : i32
    return %c0_i32, %c0_i32_0 : i32, i32
  }
  func.func @transform_5(%arg0: i32) -> (i32, i32) {
    %c0_i32 = arith.constant 0 : i32
    %c0_i32_0 = arith.constant 0 : i32
    %c0_i32_1 = arith.constant 0 : i32
    return %c0_i32, %c0_i32_0 : i32, i32
  }
  func.func @transform_6(%arg0: i32) -> (i32, i32) {
    %c0_i32 = arith.constant 0 : i32
    %c0_i32_0 = arith.constant 0 : i32
    %c0_i32_1 = arith.constant 0 : i32
    return %c0_i32, %c0_i32_0 : i32, i32
  }
  func.func @transform_7(%arg0: i32) -> (i32, i32) {
    %c0_i32 = arith.constant 0 : i32
    %c0_i32_0 = arith.constant 0 : i32
    %c0_i32_1 = arith.constant 0 : i32
    return %c0_i32, %c0_i32_0 : i32, i32
  }
}

</mosaic_0001>

<llo_original>
// kernel: tpu_custom_call.1
$region0: #{tpu_custom_call.1}
  #allocation0 [shape = 'u32[]', space=smem, size = 0x4, offset = 0x4, fixed_abs, tag = 'smem constant byte address 0x4 - core index']
  #allocation1 [shape = 'u32[144,128]{1,0:T(1,128)}', space=vmem, size = 0x12000, scoped, tag = 'internal scratch']
  #allocation2 [shape = 'f32[4,8,8]{2,1,0:T(8,128)}', space=vmem, size = 0x4000, scoped, tag = 'scratch operand']
  #allocation3 [shape = 'f32[4,8,8]{2,1,0:T(8,128)}', space=vmem, size = 0x4000, scoped, tag = 'scratch operand']
  %s0 = inlined_call_operand.hbm [shape: f32[8,32], index: 0, kind: input, shape index: {}]
  %s1 = inlined_call_operand.hbm [shape: f32[32,32], index: 1, kind: input, shape index: {}]
  %s2 = inlined_call_operand.vmem [shape: f32[1,32], index: 2, kind: input, shape index: {}]
  %s3 = inlined_call_operand.hbm [shape: f32[32,68], index: 3, kind: input, shape index: {}]
  %s4 = inlined_call_operand.vmem [shape: f32[1,68], index: 4, kind: input, shape index: {}]
  %s5 = inlined_call_operand.vmem [shape: f32[1,32], index: 5, kind: input, shape index: {}]
  %s6 = inlined_call_operand.vmem [shape: f32[1,32], index: 6, kind: input, shape index: {}]
  %s7 = inlined_call_operand.hbm [shape: f32[8,32], index: 7, kind: output, shape index: {}]
  %s8 = sld [smem:[#allocation0]]
  $region58: #{tpu_custom_call.1} parent=0
    _
  %s10 = ssub.s32 1, %s8
  %s11 = scalar_select 0, %s10, %s8
  $region1: #{tpu_custom_call.1} parent=0
    #allocation4 [shape = 'u8[4096]{0}', space=vmem, size = 0x1000, scoped, tag = 'input window, operand 0, single buffered']
    #allocation5 [shape = 's32[1]{0}', space=sflag, size = 0x4, scoped, tag = 'scoped memory for tpu_custom_call.1']
    #allocation6 [shape = 's32[1]{0}', space=sflag, size = 0x4, scoped, tag = 'scoped memory for tpu_custom_call.1']
    #allocation7 [shape = 'u8[16384]{0}', space=vmem, size = 0x4000, scoped, tag = 'input window, operand 1, single buffered']
    #allocation8 [shape = 's32[1]{0}', space=sflag, size = 0x4, scoped, tag = 'scoped memory for tpu_custom_call.1']
    #allocation9 [shape = 'u8[16384]{0}', space=vmem, size = 0x4000, scoped, tag = 'input window, operand 3, single buffered']
    #allocation10 [shape = 'u8[4096]{0}', space=vmem, size = 0x1000, scoped, tag = 'output window, operand 0, single buffered']
    %12 = vsyncpa [#allocation5], 0
    %13 = vsyncpa [#allocation8], 0
    %14 = vsyncpa [#allocation6], 0
    // Predicated region
    $region2: #{tpu_custom_call.1} parent=1 // pred_check
      _
    $region3: #{tpu_custom_call.1} parent=1 // pred_check_branch
      %16 = sbr.rel (0) target = $region5
    $region4: #{tpu_custom_call.1} parent=1 // pred_region
      %s18 = ssub.s32 128, 128
      %19 = vsyncadd [#allocation5], %s18
      %s21 = sshll.u32 [#allocation4], 4
      %s22 = int_to_ptr.vmem [resolvable:$true] %s21
      %24 = dma.hbm_to_vmem [thread:$0]  %s0, 128, %s22, [#allocation5]
    $region5: #{tpu_custom_call.1} parent=1 // pred_fallthru
      _
    // Predicated region
    $region6: #{tpu_custom_call.1} parent=1 // pred_check
      _
    $region7: #{tpu_custom_call.1} parent=1 // pred_check_branch
      %26 = sbr.rel (0) target = $region9
    $region8: #{tpu_custom_call.1} parent=1 // pred_region
      %s28 = ssub.s32 512, 512
      %29 = vsyncadd [#allocation8], %s28
      %s30 = sshll.u32 [#allocation7], 4
      %s31 = int_to_ptr.vmem [resolvable:$true] %s30
      %36 = dma.hbm_to_vmem [thread:$0]  %s1, 512, %s31, [#allocation8], 128, 128, 8
    $region9: #{tpu_custom_call.1} parent=1 // pred_fallthru
      _
    // Predicated region
    $region10: #{tpu_custom_call.1} parent=1 // pred_check
      _
    $region11: #{tpu_custom_call.1} parent=1 // pred_check_branch
      %38 = sbr.rel (0) target = $region13
    $region12: #{tpu_custom_call.1} parent=1 // pred_region
      _
    $region13: #{tpu_custom_call.1} parent=1 // pred_fallthru
      _
    // Predicated region
    $region14: #{tpu_custom_call.1} parent=1 // pred_check
      _
    $region15: #{tpu_custom_call.1} parent=1 // pred_check_branch
      %40 = sbr.rel (0) target = $region17
    $region16: #{tpu_custom_call.1} parent=1 // pred_region
      %s42 = ssub.s32 512, 512
      %43 = vsyncadd [#allocation8], %s42
      %s44 = sshll.u32 [#allocation9], 4
      %s45 = int_to_ptr.vmem [resolvable:$true] %s44
      %50 = dma.hbm_to_vmem [thread:$0]  %s3, 512, %s45, [#allocation8], 128, 128, 8
    $region17: #{tpu_custom_call.1} parent=1 // pred_fallthru
      _
    // Predicated region
    $region18: #{tpu_custom_call.1} parent=1 // pred_check
      _
    $region19: #{tpu_custom_call.1} parent=1 // pred_check_branch
      %52 = sbr.rel (0) target = $region21
    $region20: #{tpu_custom_call.1} parent=1 // pred_region
      _
    $region21: #{tpu_custom_call.1} parent=1 // pred_fallthru
      _
    // Predicated region
    $region22: #{tpu_custom_call.1} parent=1 // pred_check
      _
    $region23: #{tpu_custom_call.1} parent=1 // pred_check_branch
      %54 = sbr.rel (0) target = $region25
    $region24: #{tpu_custom_call.1} parent=1 // pred_region
      _
    $region25: #{tpu_custom_call.1} parent=1 // pred_fallthru
      _
    // Predicated region
    $region26: #{tpu_custom_call.1} parent=1 // pred_check
      _
    $region27: #{tpu_custom_call.1} parent=1 // pred_check_branch
      %56 = sbr.rel (0) target = $region29
    $region28: #{tpu_custom_call.1} parent=1 // pred_region
      _
    $region29: #{tpu_custom_call.1} parent=1 // pred_fallthru
      _
    // Predicated region
    $region30: #{tpu_custom_call.1} parent=1 // pred_check
      _
    $region31: #{tpu_custom_call.1} parent=1 // pred_check_branch
      %58 = sbr.rel (0) target = $region33
    $region32: #{tpu_custom_call.1} parent=1 // pred_region
      %59 = dma.done [#allocation5], 128
    $region33: #{tpu_custom_call.1} parent=1 // pred_fallthru
      _
    // Predicated region
    $region34: #{tpu_custom_call.1} parent=1 // pred_check
      _
    $region35: #{tpu_custom_call.1} parent=1 // pred_check_branch
      %61 = sbr.rel (0) target = $region37
    $region36: #{tpu_custom_call.1} parent=1 // pred_region
      %62 = dma.done [#allocation8], 512
    $region37: #{tpu_custom_call.1} parent=1 // pred_fallthru
      _
    // Predicated region
    $region38: #{tpu_custom_call.1} parent=1 // pred_check
      _
    $region39: #{tpu_custom_call.1} parent=1 // pred_check_branch
      %64 = sbr.rel (0) target = $region41
    $region40: #{tpu_custom_call.1} parent=1 // pred_region
      %65 = dma.done [#allocation8], 512
    $region41: #{tpu_custom_call.1} parent=1 // pred_fallthru
      _
    %p66 = scmp.eq.s32.totalorder 0, 0
    // Predicated region
    $region42: #{tpu_custom_call.1} parent=1 // pred_check
      %p67 = pneg %p66
    $region43: #{tpu_custom_call.1} parent=1 // pred_check_branch
      %69 = sbr.rel (%p67) target = $region45
    $region44: #{tpu_custom_call.1} parent=1 // pred_region
      %v70 = vld [vmem:[#allocation4] sm:$0xff]
      %v71 = vld [vmem:[#allocation7] sm:$0xff]
      %v72 = vld [vmem:[#allocation7 + $0x8] sm:$0xff]
      %v73 = vld [vmem:[#allocation7 + $0x10] sm:$0xff]
      %v74 = vld [vmem:[#allocation7 + $0x18] sm:$0xff]
      %v75 = vld [vmem:[%s2] sm:$0x1]
      %v77 = vlaneseq
      %v78 = vshrl.u32 %v77, 7
      %v79 = vsub.s32 0, %v78
      %v80 = vrot.slane %v75, %v79
      %vm82 = vcmask 261120
      %v84 = vsel %vm82, %v70, 0
      %86 = vmatprep.subr.mxu0 0.0
      %87 = vmatpush1.msra.mxu0 0.0
      %88 = vmatprep.subr.mxu0 0.0
      %89 = vmatpush1.msra.mxu0 0.0
      %90 = vmatprep.subr.mxu0 0.0
      %91 = vmatpush1.msra.mxu0 0.0
      %92 = vmatprep.subr.mxu0 0.0
      %93 = vmatpush1.msra.mxu0 0.0
      %94 = vmatprep.subr.mxu0 0.0
      %95 = vmatpush1.msra.mxu0 0.0
      %96 = vmatprep.subr.mxu0 0.0
      %97 = vmatpush1.msra.mxu0 0.0
      %98 = vmatprep.subr.mxu0 0.0
      %99 = vmatpush1.msra.mxu0 0.0
      %100 = vmatprep.subr.mxu0 0.0
      %101 = vmatpush1.msra.mxu0 0.0
      %102 = vmatprep.subr.mxu0 0.0
      %103 = vmatpush1.msra.mxu0 0.0
      %104 = vmatprep.subr.mxu0 0.0
      %105 = vmatpush1.msra.mxu0 0.0
      %106 = vmatprep.subr.mxu0 0.0
      %107 = vmatpush1.msra.mxu0 0.0
      %108 = vmatprep.subr.mxu0 0.0
      %109 = vmatpush1.msra.mxu0 0.0
      %110 = vmatprep.subr.mxu0 0.0
      %111 = vmatpush1.msra.mxu0 %v74
      %112 = vmatprep.subr.mxu0 0.0
      %113 = vmatpush1.msra.mxu0 %v73
      %114 = vmatprep.subr.mxu0 0.0
      %115 = vmatpush1.msra.mxu0 %v72
      %116 = vmatprep.subr.mxu0 0.0
      %117 = vmatpush1.msra.mxu0 %v71
      %118 = vmatprep.subr.mxu0 0.0
      %119 = vmatpush2.msra.mxu0 0.0
      %120 = vmatprep.subr.mxu0 0.0
      %121 = vmatpush2.msra.mxu0 0.0
      %122 = vmatprep.subr.mxu0 0.0
      %123 = vmatpush2.msra.mxu0 0.0
      %124 = vmatprep.subr.mxu0 0.0
      %125 = vmatpush2.msra.mxu0 0.0
      %126 = vmatprep.subr.mxu0 0.0
      %127 = vmatpush2.msra.mxu0 0.0
      %128 = vmatprep.subr.mxu0 0.0
      %129 = vmatpush2.msra.mxu0 0.0
      %130 = vmatprep.subr.mxu0 0.0
      %131 = vmatpush2.msra.mxu0 0.0
      %132 = vmatprep.subr.mxu0 0.0
      %133 = vmatpush2.msra.mxu0 0.0
      %134 = vmatprep.subr.mxu0 0.0
      %135 = vmatpush2.msra.mxu0 0.0
      %136 = vmatprep.subr.mxu0 0.0
      %137 = vmatpush2.msra.mxu0 0.0
      %138 = vmatprep.subr.mxu0 0.0
      %139 = vmatpush2.msra.mxu0 0.0
      %140 = vmatprep.subr.mxu0 0.0
      %141 = vmatpush2.msra.mxu0 0.0
      %142 = vmatprep.subr.mxu0 0.0
      %143 = vmatpush2.msra.mxu0 0.0
      %144 = vmatprep.subr.mxu0 0.0
      %145 = vmatpush2.msra.mxu0 0.0
      %146 = vmatprep.subr.mxu0 0.0
      %147 = vmatpush2.msra.mxu0 0.0
      %148 = vmatprep.subr.mxu0 0.0
      %149 = vmatpush2.msra.mxu0 0.0
      %150 = vmatprep.mubr.f32.mxu0 0.0
      %151 = vmatmul.mubr.f32.gmra.mxu0 %v84
      %v152 = vpop.f32.mrf.mxu0
      %v153 = vadd.f32 %v80, %v152
      %v154 = vpop.f32.mrf.mxu0
      %155 = vdwg.mxu0
      %157 = vrot.lane.b32.xlu0 %v153, 120
      %v158 = vpop.permute.xlu0 %157
      %160 = vrot.lane.b32.xlu0 %v153, 112
      %v161 = vpop.permute.xlu0 %160
      %163 = vrot.lane.b32.xlu0 %v153, 104
      %v164 = vpop.permute.xlu0 %163
      %vm166 = vcmask 64512
      %167 = vst.msk [vmem:[#allocation2] sm:$0xff] %vm166, %v153
      %168 = vst.msk [vmem:[#allocation2 + $0x8] sm:$0xff] %vm166, %v158
      %169 = vst.msk [vmem:[#allocation2 + $0x10] sm:$0xff] %vm166, %v161
      %170 = vst.msk [vmem:[#allocation2 + $0x18] sm:$0xff] %vm166, %v164
      %171 = vst.msk [vmem:[#allocation3] sm:$0xff] %vm166, 0.0
      %172 = vst.msk [vmem:[#allocation3 + $0x8] sm:$0xff] %vm166, 0.0
      %173 = vst.msk [vmem:[#allocation3 + $0x10] sm:$0xff] %vm166, 0.0
      %174 = vst.msk [vmem:[#allocation3 + $0x18] sm:$0xff] %vm166, 0.0
    $region45: #{tpu_custom_call.1} parent=1 // pred_fallthru
      _
    %s175 = smul.u32 0, 8
    %s176 = scalar_lea.vmem [#allocation4], %s175
    %v177 = vld [vmem:[%s176] sm:$0xff]
    %v178 = vld [vmem:[#allocation9] sm:$0xff]
    %v179 = vld [vmem:[#allocation9 + $0x8] sm:$0xff]
    %v180 = vld [vmem:[#allocation9 + $0x10] sm:$0xff]
    %v181 = vld [vmem:[#allocation9 + $0x18] sm:$0xff]
    %v182 = vld [vmem:[%s4] sm:$0x1]
    %v184 = vlaneseq
    %v185 = vshrl.u32 %v184, 7
    %v186 = vsub.s32 0, %v185
    %v187 = vrot.slane %v182, %v186
    %vm189 = vcmask 261120
    %v191 = vsel %vm189, %v177, 0
    %193 = vmatprep.subr.mxu0 0.0
    %194 = vmatpush1.msra.mxu0 0.0
    %195 = vmatprep.subr.mxu0 0.0
    %196 = vmatpush1.msra.mxu0 0.0
    %197 = vmatprep.subr.mxu0 0.0
    %198 = vmatpush1.msra.mxu0 0.0
    %199 = vmatprep.subr.mxu0 0.0
    %200 = vmatpush1.msra.mxu0 0.0
    %201 = vmatprep.subr.mxu0 0.0
    %202 = vmatpush1.msra.mxu0 0.0
    %203 = vmatprep.subr.mxu0 0.0
    %204 = vmatpush1.msra.mxu0 0.0
    %205 = vmatprep.subr.mxu0 0.0
    %206 = vmatpush1.msra.mxu0 0.0
    %207 = vmatprep.subr.mxu0 0.0
    %208 = vmatpush1.msra.mxu0 0.0
    %209 = vmatprep.subr.mxu0 0.0
    %210 = vmatpush1.msra.mxu0 0.0
    %211 = vmatprep.subr.mxu0 0.0
    %212 = vmatpush1.msra.mxu0 0.0
    %213 = vmatprep.subr.mxu0 0.0
    %214 = vmatpush1.msra.mxu0 0.0
    %215 = vmatprep.subr.mxu0 0.0
    %216 = vmatpush1.msra.mxu0 0.0
    %217 = vmatprep.subr.mxu0 0.0
    %218 = vmatpush1.msra.mxu0 %v181
    %219 = vmatprep.subr.mxu0 0.0
    %220 = vmatpush1.msra.mxu0 %v180
    %221 = vmatprep.subr.mxu0 0.0
    %222 = vmatpush1.msra.mxu0 %v179
    %223 = vmatprep.subr.mxu0 0.0
    %224 = vmatpush1.msra.mxu0 %v178
    %225 = vmatprep.subr.mxu0 0.0
    %226 = vmatpush2.msra.mxu0 0.0
    %227 = vmatprep.subr.mxu0 0.0
    %228 = vmatpush2.msra.mxu0 0.0
    %229 = vmatprep.subr.mxu0 0.0
    %230 = vmatpush2.msra.mxu0 0.0
    %231 = vmatprep.subr.mxu0 0.0
    %232 = vmatpush2.msra.mxu0 0.0
    %233 = vmatprep.subr.mxu0 0.0
    %234 = vmatpush2.msra.mxu0 0.0
    %235 = vmatprep.subr.mxu0 0.0
    %236 = vmatpush2.msra.mxu0 0.0
    %237 = vmatprep.subr.mxu0 0.0
    %238 = vmatpush2.msra.mxu0 0.0
    %239 = vmatprep.subr.mxu0 0.0
    %240 = vmatpush2.msra.mxu0 0.0
    %241 = vmatprep.subr.mxu0 0.0
    %242 = vmatpush2.msra.mxu0 0.0
    %243 = vmatprep.subr.mxu0 0.0
    %244 = vmatpush2.msra.mxu0 0.0
    %245 = vmatprep.subr.mxu0 0.0
    %246 = vmatpush2.msra.mxu0 0.0
    %247 = vmatprep.subr.mxu0 0.0
    %248 = vmatpush2.msra.mxu0 0.0
    %249 = vmatprep.subr.mxu0 0.0
    %250 = vmatpush2.msra.mxu0 0.0
    %251 = vmatprep.subr.mxu0 0.0
    %252 = vmatpush2.msra.mxu0 0.0
    %253 = vmatprep.subr.mxu0 0.0
    %254 = vmatpush2.msra.mxu0 0.0
    %255 = vmatprep.subr.mxu0 0.0
    %256 = vmatpush2.msra.mxu0 0.0
    %257 = vmatprep.mubr.f32.mxu0 0.0
    %258 = vmatmul.mubr.f32.gmra.mxu0 %v191
    %v259 = vpop.f32.mrf.mxu0
    %v260 = vadd.f32 %v187, %v259
    %v261 = vpop.f32.mrf.mxu0
    %262 = vdwg.mxu0
    %264 = vrot.lane.b32.xlu0 %v260, 120
    %v265 = vpop.permute.xlu0 %264
    %266 = vrot.lane.b32.xlu0 %v260, 112
    %v267 = vpop.permute.xlu0 %266
    %268 = vrot.lane.b32.xlu0 %v260, 104
    %v269 = vpop.permute.xlu0 %268
    %v270 = vxor.u32 %v260, 2147483648
    %v271 = vmul.f32 %v270, 1.442695
    %v272 = vpow.pop %v271
    %v273 = vadd.f32 %v272, 1.0
    %v274 = vrcp.pop %v273
    %v275 = vmul.f32 1.0, %v274
    %277 = vset.pattern.permute.xlu0 64
    %278 = vperm.xlu0 %277, %v275
    %v279 = vpop.permute.xlu0 %278
    %v281 = vmul.f32 %v260, %v279
    %282 = vset.pattern.permute.xlu0 65
    %283 = vperm.xlu0 %282, %v275
    %v284 = vpop.permute.xlu0 %283
    %v286 = vmul.f32 %v260, %v284
    %287 = vset.pattern.permute.xlu0 66
    %288 = vperm.xlu0 %287, %v275
    %v289 = vpop.permute.xlu0 %288
    %v291 = vmul.f32 %v260, %v289
    %292 = vset.pattern.permute.xlu0 67
    %293 = vperm.xlu0 %292, %v275
    %v294 = vpop.permute.xlu0 %293
    %v296 = vmul.f32 %v260, %v294
    %298 = vrot.lane.b32.xlu0 %v286, 120
    %v299 = vpop.permute.xlu0 %298
    %301 = vrot.lane.b32.xlu0 %v291, 112
    %v302 = vpop.permute.xlu0 %301
    %304 = vrot.lane.b32.xlu0 %v296, 104
    %v305 = vpop.permute.xlu0 %304
    %v306 = vld [vmem:[#allocation2] sm:$0xff]
    %v307 = vld [vmem:[#allocation2 + $0x8] sm:$0xff]
    %v308 = vld [vmem:[#allocation2 + $0x10] sm:$0xff]
    %v309 = vld [vmem:[#allocation2 + $0x18] sm:$0xff]
    %vm310 = vcmask 64512
    %v312 = vsel %vm310, %v306, 0
    %v314 = vsel %vm310, %v260, 0
    %316 = vmatprep.subr.mxu0 0.0
    %317 = vmatpush1.xpose.msra.mxu0 0.0
    %318 = vmatprep.subr.mxu0 0.0
    %319 = vmatpush1.xpose.msra.mxu0 0.0
    %320 = vmatprep.subr.mxu0 0.0
    %321 = vmatpush1.xpose.msra.mxu0 0.0
    %322 = vmatprep.subr.mxu0 0.0
    %323 = vmatpush1.xpose.msra.mxu0 0.0
    %324 = vmatprep.subr.mxu0 0.0
    %325 = vmatpush1.xpose.msra.mxu0 0.0
    %326 = vmatprep.subr.mxu0 0.0
    %327 = vmatpush1.xpose.msra.mxu0 0.0
    %328 = vmatprep.subr.mxu0 0.0
    %329 = vmatpush1.xpose.msra.mxu0 0.0
    %330 = vmatprep.subr.mxu0 0.0
    %331 = vmatpush1.xpose.msra.mxu0 0.0
    %332 = vmatprep.subr.mxu0 0.0
    %333 = vmatpush1.xpose.msra.mxu0 0.0
    %334 = vmatprep.subr.mxu0 0.0
    %335 = vmatpush1.xpose.msra.mxu0 0.0
    %336 = vmatprep.subr.mxu0 0.0
    %337 = vmatpush1.xpose.msra.mxu0 0.0
    %338 = vmatprep.subr.mxu0 0.0
    %339 = vmatpush1.xpose.msra.mxu0 0.0
    %340 = vmatprep.subr.mxu0 0.0
    %341 = vmatpush1.xpose.msra.mxu0 0.0
    %342 = vmatprep.subr.mxu0 0.0
    %343 = vmatpush1.xpose.msra.mxu0 0.0
    %344 = vmatprep.subr.mxu0 0.0
    %345 = vmatpush1.xpose.msra.mxu0 0.0
    %346 = vmatprep.subr.mxu0 0.0
    %347 = vmatpush1.xpose.msra.mxu0 %v314
    %348 = vmatprep.subr.mxu0 0.0
    %349 = vmatpush2.xpose.msra.mxu0 0.0
    %350 = vmatprep.subr.mxu0 0.0
    %351 = vmatpush2.xpose.msra.mxu0 0.0
    %352 = vmatprep.subr.mxu0 0.0
    %353 = vmatpush2.xpose.msra.mxu0 0.0
    %354 = vmatprep.subr.mxu0 0.0
    %355 = vmatpush2.xpose.msra.mxu0 0.0
    %356 = vmatprep.subr.mxu0 0.0
    %357 = vmatpush2.xpose.msra.mxu0 0.0
    %358 = vmatprep.subr.mxu0 0.0
    %359 = vmatpush2.xpose.msra.mxu0 0.0
    %360 = vmatprep.subr.mxu0 0.0
    %361 = vmatpush2.xpose.msra.mxu0 0.0
    %362 = vmatprep.subr.mxu0 0.0
    %363 = vmatpush2.xpose.msra.mxu0 0.0
    %364 = vmatprep.subr.mxu0 0.0
    %365 = vmatpush2.xpose.msra.mxu0 0.0
    %366 = vmatprep.subr.mxu0 0.0
    %367 = vmatpush2.xpose.msra.mxu0 0.0
    %368 = vmatprep.subr.mxu0 0.0
    %369 = vmatpush2.xpose.msra.mxu0 0.0
    %370 = vmatprep.subr.mxu0 0.0
    %371 = vmatpush2.xpose.msra.mxu0 0.0
    %372 = vmatprep.subr.mxu0 0.0
    %373 = vmatpush2.xpose.msra.mxu0 0.0
    %374 = vmatprep.subr.mxu0 0.0
    %375 = vmatpush2.xpose.msra.mxu0 0.0
    %376 = vmatprep.subr.mxu0 0.0
    %377 = vmatpush2.xpose.msra.mxu0 0.0
    %378 = vmatprep.subr.mxu0 0.0
    %379 = vmatpush2.xpose.msra.mxu0 0.0
    %380 = vmatprep.mubr.f32.mxu0 0.0
    %381 = vmatmul.mubr.f32.gmra.mxu0 %v312
    %v382 = vpop.f32.mrf.mxu0
    %v383 = vadd.f32 0.0, %v382
    %v384 = vpop.f32.mrf.mxu0
    %385 = vdwg.mxu0
    %v387 = vsel %vm310, %v307, 0
    %v389 = vsel %vm310, %v265, 0
    %391 = vmatprep.subr.mxu0 0.0
    %392 = vmatpush1.xpose.msra.mxu0 0.0
    %393 = vmatprep.subr.mxu0 0.0
    %394 = vmatpush1.xpose.msra.mxu0 0.0
    %395 = vmatprep.subr.mxu0 0.0
    %396 = vmatpush1.xpose.msra.mxu0 0.0
    %397 = vmatprep.subr.mxu0 0.0
    %398 = vmatpush1.xpose.msra.mxu0 0.0
    %399 = vmatprep.subr.mxu0 0.0
    %400 = vmatpush1.xpose.msra.mxu0 0.0
    %401 = vmatprep.subr.mxu0 0.0
    %402 = vmatpush1.xpose.msra.mxu0 0.0
    %403 = vmatprep.subr.mxu0 0.0
    %404 = vmatpush1.xpose.msra.mxu0 0.0
    %405 = vmatprep.subr.mxu0 0.0
    %406 = vmatpush1.xpose.msra.mxu0 0.0
    %407 = vmatprep.subr.mxu0 0.0
    %408 = vmatpush1.xpose.msra.mxu0 0.0
    %409 = vmatprep.subr.mxu0 0.0
    %410 = vmatpush1.xpose.msra.mxu0 0.0
    %411 = vmatprep.subr.mxu0 0.0
    %412 = vmatpush1.xpose.msra.mxu0 0.0
    %413 = vmatprep.subr.mxu0 0.0
    %414 = vmatpush1.xpose.msra.mxu0 0.0
    %415 = vmatprep.subr.mxu0 0.0
    %416 = vmatpush1.xpose.msra.mxu0 0.0
    %417 = vmatprep.subr.mxu0 0.0
    %418 = vmatpush1.xpose.msra.mxu0 0.0
    %419 = vmatprep.subr.mxu0 0.0
    %420 = vmatpush1.xpose.msra.mxu0 0.0
    %421 = vmatprep.subr.mxu0 0.0
    %422 = vmatpush1.xpose.msra.mxu0 %v389
    %423 = vmatprep.subr.mxu0 0.0
    %424 = vmatpush2.xpose.msra.mxu0 0.0
    %425 = vmatprep.subr.mxu0 0.0
    %426 = vmatpush2.xpose.msra.mxu0 0.0
    %427 = vmatprep.subr.mxu0 0.0
    %428 = vmatpush2.xpose.msra.mxu0 0.0
    %429 = vmatprep.subr.mxu0 0.0
    %430 = vmatpush2.xpose.msra.mxu0 0.0
    %431 = vmatprep.subr.mxu0 0.0
    %432 = vmatpush2.xpose.msra.mxu0 0.0
    %433 = vmatprep.subr.mxu0 0.0
    %434 = vmatpush2.xpose.msra.mxu0 0.0
    %435 = vmatprep.subr.mxu0 0.0
    %436 = vmatpush2.xpose.msra.mxu0 0.0
    %437 = vmatprep.subr.mxu0 0.0
    %438 = vmatpush2.xpose.msra.mxu0 0.0
    %439 = vmatprep.subr.mxu0 0.0
    %440 = vmatpush2.xpose.msra.mxu0 0.0
    %441 = vmatprep.subr.mxu0 0.0
    %442 = vmatpush2.xpose.msra.mxu0 0.0
    %443 = vmatprep.subr.mxu0 0.0
    %444 = vmatpush2.xpose.msra.mxu0 0.0
    %445 = vmatprep.subr.mxu0 0.0
    %446 = vmatpush2.xpose.msra.mxu0 0.0
    %447 = vmatprep.subr.mxu0 0.0
    %448 = vmatpush2.xpose.msra.mxu0 0.0
    %449 = vmatprep.subr.mxu0 0.0
    %450 = vmatpush2.xpose.msra.mxu0 0.0
    %451 = vmatprep.subr.mxu0 0.0
    %452 = vmatpush2.xpose.msra.mxu0 0.0
    %453 = vmatprep.subr.mxu0 0.0
    %454 = vmatpush2.xpose.msra.mxu0 0.0
    %455 = vmatprep.mubr.f32.mxu0 0.0
    %456 = vmatmul.mubr.f32.gmra.mxu0 %v387
    %v457 = vpop.f32.mrf.mxu0
    %v458 = vadd.f32 0.0, %v457
    %v459 = vpop.f32.mrf.mxu0
    %460 = vdwg.mxu0
    %v462 = vsel %vm310, %v308, 0
    %v464 = vsel %vm310, %v267, 0
    %466 = vmatprep.subr.mxu0 0.0
    %467 = vmatpush1.xpose.msra.mxu0 0.0
    %468 = vmatprep.subr.mxu0 0.0
    %469 = vmatpush1.xpose.msra.mxu0 0.0
    %470 = vmatprep.subr.mxu0 0.0
    %471 = vmatpush1.xpose.msra.mxu0 0.0
    %472 = vmatprep.subr.mxu0 0.0
    %473 = vmatpush1.xpose.msra.mxu0 0.0
    %474 = vmatprep.subr.mxu0 0.0
    %475 = vmatpush1.xpose.msra.mxu0 0.0
    %476 = vmatprep.subr.mxu0 0.0
    %477 = vmatpush1.xpose.msra.mxu0 0.0
    %478 = vmatprep.subr.mxu0 0.0
    %479 = vmatpush1.xpose.msra.mxu0 0.0
    %480 = vmatprep.subr.mxu0 0.0
    %481 = vmatpush1.xpose.msra.mxu0 0.0
    %482 = vmatprep.subr.mxu0 0.0
    %483 = vmatpush1.xpose.msra.mxu0 0.0
    %484 = vmatprep.subr.mxu0 0.0
    %485 = vmatpush1.xpose.msra.mxu0 0.0
    %486 = vmatprep.subr.mxu0 0.0
    %487 = vmatpush1.xpose.msra.mxu0 0.0
    %488 = vmatprep.subr.mxu0 0.0
    %489 = vmatpush1.xpose.msra.mxu0 0.0
    %490 = vmatprep.subr.mxu0 0.0
    %491 = vmatpush1.xpose.msra.mxu0 0.0
    %492 = vmatprep.subr.mxu0 0.0
    %493 = vmatpush1.xpose.msra.mxu0 0.0
    %494 = vmatprep.subr.mxu0 0.0
    %495 = vmatpush1.xpose.msra.mxu0 0.0
    %496 = vmatprep.subr.mxu0 0.0
    %497 = vmatpush1.xpose.msra.mxu0 %v464
    %498 = vmatprep.subr.mxu0 0.0
    %499 = vmatpush2.xpose.msra.mxu0 0.0
    %500 = vmatprep.subr.mxu0 0.0
    %501 = vmatpush2.xpose.msra.mxu0 0.0
    %502 = vmatprep.subr.mxu0 0.0
    %503 = vmatpush2.xpose.msra.mxu0 0.0
    %504 = vmatprep.subr.mxu0 0.0
    %505 = vmatpush2.xpose.msra.mxu0 0.0
    %506 = vmatprep.subr.mxu0 0.0
    %507 = vmatpush2.xpose.msra.mxu0 0.0
    %508 = vmatprep.subr.mxu0 0.0
    %509 = vmatpush2.xpose.msra.mxu0 0.0
    %510 = vmatprep.subr.mxu0 0.0
    %511 = vmatpush2.xpose.msra.mxu0 0.0
    %512 = vmatprep.subr.mxu0 0.0
    %513 = vmatpush2.xpose.msra.mxu0 0.0
    %514 = vmatprep.subr.mxu0 0.0
    %515 = vmatpush2.xpose.msra.mxu0 0.0
    %516 = vmatprep.subr.mxu0 0.0
    %517 = vmatpush2.xpose.msra.mxu0 0.0
    %518 = vmatprep.subr.mxu0 0.0
    %519 = vmatpush2.xpose.msra.mxu0 0.0
    %520 = vmatprep.subr.mxu0 0.0
    %521 = vmatpush2.xpose.msra.mxu0 0.0
    %522 = vmatprep.subr.mxu0 0.0
    %523 = vmatpush2.xpose.msra.mxu0 0.0
    %524 = vmatprep.subr.mxu0 0.0
    %525 = vmatpush2.xpose.msra.mxu0 0.0
    %526 = vmatprep.subr.mxu0 0.0
    %527 = vmatpush2.xpose.msra.mxu0 0.0
    %528 = vmatprep.subr.mxu0 0.0
    %529 = vmatpush2.xpose.msra.mxu0 0.0
    %530 = vmatprep.mubr.f32.mxu0 0.0
    %531 = vmatmul.mubr.f32.gmra.mxu0 %v462
    %v532 = vpop.f32.mrf.mxu0
    %v533 = vadd.f32 0.0, %v532
    %v534 = vpop.f32.mrf.mxu0
    %535 = vdwg.mxu0
    %v537 = vsel %vm310, %v309, 0
    %v539 = vsel %vm310, %v269, 0
    %541 = vmatprep.subr.mxu0 0.0
    %542 = vmatpush1.xpose.msra.mxu0 0.0
    %543 = vmatprep.subr.mxu0 0.0
    %544 = vmatpush1.xpose.msra.mxu0 0.0
    %545 = vmatprep.subr.mxu0 0.0
    %546 = vmatpush1.xpose.msra.mxu0 0.0
    %547 = vmatprep.subr.mxu0 0.0
    %548 = vmatpush1.xpose.msra.mxu0 0.0
    %549 = vmatprep.subr.mxu0 0.0
    %550 = vmatpush1.xpose.msra.mxu0 0.0
    %551 = vmatprep.subr.mxu0 0.0
    %552 = vmatpush1.xpose.msra.mxu0 0.0
    %553 = vmatprep.subr.mxu0 0.0
    %554 = vmatpush1.xpose.msra.mxu0 0.0
    %555 = vmatprep.subr.mxu0 0.0
    %556 = vmatpush1.xpose.msra.mxu0 0.0
    %557 = vmatprep.subr.mxu0 0.0
    %558 = vmatpush1.xpose.msra.mxu0 0.0
    %559 = vmatprep.subr.mxu0 0.0
    %560 = vmatpush1.xpose.msra.mxu0 0.0
    %561 = vmatprep.subr.mxu0 0.0
    %562 = vmatpush1.xpose.msra.mxu0 0.0
    %563 = vmatprep.subr.mxu0 0.0
    %564 = vmatpush1.xpose.msra.mxu0 0.0
    %565 = vmatprep.subr.mxu0 0.0
    %566 = vmatpush1.xpose.msra.mxu0 0.0
    %567 = vmatprep.subr.mxu0 0.0
    %568 = vmatpush1.xpose.msra.mxu0 0.0
    %569 = vmatprep.subr.mxu0 0.0
    %570 = vmatpush1.xpose.msra.mxu0 0.0
    %571 = vmatprep.subr.mxu0 0.0
    %572 = vmatpush1.xpose.msra.mxu0 %v539
    %573 = vmatprep.subr.mxu0 0.0
    %574 = vmatpush2.xpose.msra.mxu0 0.0
    %575 = vmatprep.subr.mxu0 0.0
    %576 = vmatpush2.xpose.msra.mxu0 0.0
    %577 = vmatprep.subr.mxu0 0.0
    %578 = vmatpush2.xpose.msra.mxu0 0.0
    %579 = vmatprep.subr.mxu0 0.0
    %580 = vmatpush2.xpose.msra.mxu0 0.0
    %581 = vmatprep.subr.mxu0 0.0
    %582 = vmatpush2.xpose.msra.mxu0 0.0
    %583 = vmatprep.subr.mxu0 0.0
    %584 = vmatpush2.xpose.msra.mxu0 0.0
    %585 = vmatprep.subr.mxu0 0.0
    %586 = vmatpush2.xpose.msra.mxu0 0.0
    %587 = vmatprep.subr.mxu0 0.0
    %588 = vmatpush2.xpose.msra.mxu0 0.0
    %589 = vmatprep.subr.mxu0 0.0
    %590 = vmatpush2.xpose.msra.mxu0 0.0
    %591 = vmatprep.subr.mxu0 0.0
    %592 = vmatpush2.xpose.msra.mxu0 0.0
    %593 = vmatprep.subr.mxu0 0.0
    %594 = vmatpush2.xpose.msra.mxu0 0.0
    %595 = vmatprep.subr.mxu0 0.0
    %596 = vmatpush2.xpose.msra.mxu0 0.0
    %597 = vmatprep.subr.mxu0 0.0
    %598 = vmatpush2.xpose.msra.mxu0 0.0
    %599 = vmatprep.subr.mxu0 0.0
    %600 = vmatpush2.xpose.msra.mxu0 0.0
    %601 = vmatprep.subr.mxu0 0.0
    %602 = vmatpush2.xpose.msra.mxu0 0.0
    %603 = vmatprep.subr.mxu0 0.0
    %604 = vmatpush2.xpose.msra.mxu0 0.0
    %605 = vmatprep.mubr.f32.mxu0 0.0
    %606 = vmatmul.mubr.f32.gmra.mxu0 %v537
    %v607 = vpop.f32.mrf.mxu0
    %v608 = vadd.f32 0.0, %v607
    %v609 = vpop.f32.mrf.mxu0
    %610 = vdwg.mxu0
    %v611 = vsel %vm310, %v383, -inf
    %v612 = vrot.slane %v611, 4
    %v613 = vmax.f32 %v611, %v612
    %v614 = vrot.slane %v613, 2
    %v615 = vmax.f32 %v613, %v614
    %v616 = vrot.slane %v615, 1
    %v617 = vmax.f32 %v615, %v616
    %v618 = vsel %vm310, %v458, -inf
    %v619 = vrot.slane %v618, 4
    %v620 = vmax.f32 %v618, %v619
    %v621 = vrot.slane %v620, 2
    %v622 = vmax.f32 %v620, %v621
    %v623 = vrot.slane %v622, 1
    %v624 = vmax.f32 %v622, %v623
    %v625 = vsel %vm310, %v533, -inf
    %v626 = vrot.slane %v625, 4
    %v627 = vmax.f32 %v625, %v626
    %v628 = vrot.slane %v627, 2
    %v629 = vmax.f32 %v627, %v628
    %v630 = vrot.slane %v629, 1
    %v631 = vmax.f32 %v629, %v630
    %v632 = vsel %vm310, %v608, -inf
    %v633 = vrot.slane %v632, 4
    %v634 = vmax.f32 %v632, %v633
    %v635 = vrot.slane %v634, 2
    %v636 = vmax.f32 %v634, %v635
    %v637 = vrot.slane %v636, 1
    %v638 = vmax.f32 %v636, %v637
    %v639 = vsub.f32 %v383, %v617
    %v640 = vsub.f32 %v458, %v624
    %v641 = vsub.f32 %v533, %v631
    %v642 = vsub.f32 %v608, %v638
    %v643 = vmul.f32 %v639, 1.442695
    %v644 = vpow.pop %v643
    %v645 = vmul.f32 %v640, 1.442695
    %v646 = vpow.pop %v645
    %v647 = vmul.f32 %v641, 1.442695
    %v648 = vpow.pop %v647
    %v649 = vmul.f32 %v642, 1.442695
    %v650 = vpow.pop %v649
    %v651 = vsel %vm310, %v644, 0.0
    %v652 = vrot.slane %v651, 4
    %v653 = vadd.f32 %v651, %v652
    %v654 = vrot.slane %v653, 2
    %v655 = vadd.f32 %v653, %v654
    %v656 = vrot.slane %v655, 1
    %v657 = vadd.f32 %v655, %v656
    %v658 = vsel %vm310, %v646, 0.0
    %v659 = vrot.slane %v658, 4
    %v660 = vadd.f32 %v658, %v659
    %v661 = vrot.slane %v660, 2
    %v662 = vadd.f32 %v660, %v661
    %v663 = vrot.slane %v662, 1
    %v664 = vadd.f32 %v662, %v663
    %v665 = vsel %vm310, %v648, 0.0
    %v666 = vrot.slane %v665, 4
    %v667 = vadd.f32 %v665, %v666
    %v668 = vrot.slane %v667, 2
    %v669 = vadd.f32 %v667, %v668
    %v670 = vrot.slane %v669, 1
    %v671 = vadd.f32 %v669, %v670
    %v672 = vsel %vm310, %v650, 0.0
    %v673 = vrot.slane %v672, 4
    %v674 = vadd.f32 %v672, %v673
    %v675 = vrot.slane %v674, 2
    %v676 = vadd.f32 %v674, %v675
    %v677 = vrot.slane %v676, 1
    %v678 = vadd.f32 %v676, %v677
    %v679 = vrcp.pop %v657
    %v680 = vrcp.pop %v664
    %v681 = vrcp.pop %v671
    %v682 = vrcp.pop %v678
    %v683 = vmul.f32 %v644, %v679
    %v684 = vmul.f32 %v646, %v680
    %v685 = vmul.f32 %v648, %v681
    %v686 = vmul.f32 %v650, %v682
    %v687 = vld [vmem:[#allocation3] sm:$0xff]
    %v688 = vld [vmem:[#allocation3 + $0x8] sm:$0xff]
    %v689 = vld [vmem:[#allocation3 + $0x10] sm:$0xff]
    %v690 = vld [vmem:[#allocation3 + $0x18] sm:$0xff]
    %692 = vrot.lane.b32.xlu0 %v281, 96
    %v693 = vpop.permute.xlu0 %692
    %v696 = vsel %vm310, %v683, 0
    %698 = vmatprep.subr.mxu0 0.0
    %699 = vmatpush1.msra.mxu0 0.0
    %700 = vmatprep.subr.mxu0 0.0
    %701 = vmatpush1.msra.mxu0 0.0
    %702 = vmatprep.subr.mxu0 0.0
    %703 = vmatpush1.msra.mxu0 0.0
    %704 = vmatprep.subr.mxu0 0.0
    %705 = vmatpush1.msra.mxu0 0.0
    %706 = vmatprep.subr.mxu0 0.0
    %707 = vmatpush1.msra.mxu0 0.0
    %708 = vmatprep.subr.mxu0 0.0
    %709 = vmatpush1.msra.mxu0 0.0
    %710 = vmatprep.subr.mxu0 0.0
    %711 = vmatpush1.msra.mxu0 0.0
    %712 = vmatprep.subr.mxu0 0.0
    %713 = vmatpush1.msra.mxu0 0.0
    %714 = vmatprep.subr.mxu0 0.0
    %715 = vmatpush1.msra.mxu0 0.0
    %716 = vmatprep.subr.mxu0 0.0
    %717 = vmatpush1.msra.mxu0 0.0
    %718 = vmatprep.subr.mxu0 0.0
    %719 = vmatpush1.msra.mxu0 0.0
    %720 = vmatprep.subr.mxu0 0.0
    %721 = vmatpush1.msra.mxu0 0.0
    %722 = vmatprep.subr.mxu0 0.0
    %723 = vmatpush1.msra.mxu0 0.0
    %724 = vmatprep.subr.mxu0 0.0
    %725 = vmatpush1.msra.mxu0 0.0
    %726 = vmatprep.subr.mxu0 0.0
    %727 = vmatpush1.msra.mxu0 0.0
    %728 = vmatprep.subr.mxu0 0.0
    %729 = vmatpush1.msra.mxu0 %v693
    %730 = vmatprep.subr.mxu0 0.0
    %731 = vmatpush2.msra.mxu0 0.0
    %732 = vmatprep.subr.mxu0 0.0
    %733 = vmatpush2.msra.mxu0 0.0
    %734 = vmatprep.subr.mxu0 0.0
    %735 = vmatpush2.msra.mxu0 0.0
    %736 = vmatprep.subr.mxu0 0.0
    %737 = vmatpush2.msra.mxu0 0.0
    %738 = vmatprep.subr.mxu0 0.0
    %739 = vmatpush2.msra.mxu0 0.0
    %740 = vmatprep.subr.mxu0 0.0
    %741 = vmatpush2.msra.mxu0 0.0
    %742 = vmatprep.subr.mxu0 0.0
    %743 = vmatpush2.msra.mxu0 0.0
    %744 = vmatprep.subr.mxu0 0.0
    %745 = vmatpush2.msra.mxu0 0.0
    %746 = vmatprep.subr.mxu0 0.0
    %747 = vmatpush2.msra.mxu0 0.0
    %748 = vmatprep.subr.mxu0 0.0
    %749 = vmatpush2.msra.mxu0 0.0
    %750 = vmatprep.subr.mxu0 0.0
    %751 = vmatpush2.msra.mxu0 0.0
    %752 = vmatprep.subr.mxu0 0.0
    %753 = vmatpush2.msra.mxu0 0.0
    %754 = vmatprep.subr.mxu0 0.0
    %755 = vmatpush2.msra.mxu0 0.0
    %756 = vmatprep.subr.mxu0 0.0
    %757 = vmatpush2.msra.mxu0 0.0
    %758 = vmatprep.subr.mxu0 0.0
    %759 = vmatpush2.msra.mxu0 0.0
    %760 = vmatprep.subr.mxu0 0.0
    %761 = vmatpush2.msra.mxu0 0.0
    %762 = vmatprep.mubr.f32.mxu0 0.0
    %763 = vmatmul.mubr.f32.gmra.mxu0 %v696
    %v764 = vpop.f32.mrf.mxu0
    %v765 = vadd.f32 0.0, %v764
    %v766 = vpop.f32.mrf.mxu0
    %767 = vdwg.mxu0
    %768 = vrot.lane.b32.xlu0 %v299, 96
    %v769 = vpop.permute.xlu0 %768
    %v772 = vsel %vm310, %v684, 0
    %774 = vmatprep.subr.mxu0 0.0
    %775 = vmatpush1.msra.mxu0 0.0
    %776 = vmatprep.subr.mxu0 0.0
    %777 = vmatpush1.msra.mxu0 0.0
    %778 = vmatprep.subr.mxu0 0.0
    %779 = vmatpush1.msra.mxu0 0.0
    %780 = vmatprep.subr.mxu0 0.0
    %781 = vmatpush1.msra.mxu0 0.0
    %782 = vmatprep.subr.mxu0 0.0
    %783 = vmatpush1.msra.mxu0 0.0
    %784 = vmatprep.subr.mxu0 0.0
    %785 = vmatpush1.msra.mxu0 0.0
    %786 = vmatprep.subr.mxu0 0.0
    %787 = vmatpush1.msra.mxu0 0.0
    %788 = vmatprep.subr.mxu0 0.0
    %789 = vmatpush1.msra.mxu0 0.0
    %790 = vmatprep.subr.mxu0 0.0
    %791 = vmatpush1.msra.mxu0 0.0
    %792 = vmatprep.subr.mxu0 0.0
    %793 = vmatpush1.msra.mxu0 0.0
    %794 = vmatprep.subr.mxu0 0.0
    %795 = vmatpush1.msra.mxu0 0.0
    %796 = vmatprep.subr.mxu0 0.0
    %797 = vmatpush1.msra.mxu0 0.0
    %798 = vmatprep.subr.mxu0 0.0
    %799 = vmatpush1.msra.mxu0 0.0
    %800 = vmatprep.subr.mxu0 0.0
    %801 = vmatpush1.msra.mxu0 0.0
    %802 = vmatprep.subr.mxu0 0.0
    %803 = vmatpush1.msra.mxu0 0.0
    %804 = vmatprep.subr.mxu0 0.0
    %805 = vmatpush1.msra.mxu0 %v769
    %806 = vmatprep.subr.mxu0 0.0
    %807 = vmatpush2.msra.mxu0 0.0
    %808 = vmatprep.subr.mxu0 0.0
    %809 = vmatpush2.msra.mxu0 0.0
    %810 = vmatprep.subr.mxu0 0.0
    %811 = vmatpush2.msra.mxu0 0.0
    %812 = vmatprep.subr.mxu0 0.0
    %813 = vmatpush2.msra.mxu0 0.0
    %814 = vmatprep.subr.mxu0 0.0
    %815 = vmatpush2.msra.mxu0 0.0
    %816 = vmatprep.subr.mxu0 0.0
    %817 = vmatpush2.msra.mxu0 0.0
    %818 = vmatprep.subr.mxu0 0.0
    %819 = vmatpush2.msra.mxu0 0.0
    %820 = vmatprep.subr.mxu0 0.0
    %821 = vmatpush2.msra.mxu0 0.0
    %822 = vmatprep.subr.mxu0 0.0
    %823 = vmatpush2.msra.mxu0 0.0
    %824 = vmatprep.subr.mxu0 0.0
    %825 = vmatpush2.msra.mxu0 0.0
    %826 = vmatprep.subr.mxu0 0.0
    %827 = vmatpush2.msra.mxu0 0.0
    %828 = vmatprep.subr.mxu0 0.0
    %829 = vmatpush2.msra.mxu0 0.0
    %830 = vmatprep.subr.mxu0 0.0
    %831 = vmatpush2.msra.mxu0 0.0
    %832 = vmatprep.subr.mxu0 0.0
    %833 = vmatpush2.msra.mxu0 0.0
    %834 = vmatprep.subr.mxu0 0.0
    %835 = vmatpush2.msra.mxu0 0.0
    %836 = vmatprep.subr.mxu0 0.0
    %837 = vmatpush2.msra.mxu0 0.0
    %838 = vmatprep.mubr.f32.mxu0 0.0
    %839 = vmatmul.mubr.f32.gmra.mxu0 %v772
    %v840 = vpop.f32.mrf.mxu0
    %v841 = vadd.f32 0.0, %v840
    %v842 = vpop.f32.mrf.mxu0
    %843 = vdwg.mxu0
    %844 = vrot.lane.b32.xlu0 %v302, 96
    %v845 = vpop.permute.xlu0 %844
    %v848 = vsel %vm310, %v685, 0
    %850 = vmatprep.subr.mxu0 0.0
    %851 = vmatpush1.msra.mxu0 0.0
    %852 = vmatprep.subr.mxu0 0.0
    %853 = vmatpush1.msra.mxu0 0.0
    %854 = vmatprep.subr.mxu0 0.0
    %855 = vmatpush1.msra.mxu0 0.0
    %856 = vmatprep.subr.mxu0 0.0
    %857 = vmatpush1.msra.mxu0 0.0
    %858 = vmatprep.subr.mxu0 0.0
    %859 = vmatpush1.msra.mxu0 0.0
    %860 = vmatprep.subr.mxu0 0.0
    %861 = vmatpush1.msra.mxu0 0.0
    %862 = vmatprep.subr.mxu0 0.0
    %863 = vmatpush1.msra.mxu0 0.0
    %864 = vmatprep.subr.mxu0 0.0
    %865 = vmatpush1.msra.mxu0 0.0
    %866 = vmatprep.subr.mxu0 0.0
    %867 = vmatpush1.msra.mxu0 0.0
    %868 = vmatprep.subr.mxu0 0.0
    %869 = vmatpush1.msra.mxu0 0.0
    %870 = vmatprep.subr.mxu0 0.0
    %871 = vmatpush1.msra.mxu0 0.0
    %872 = vmatprep.subr.mxu0 0.0
    %873 = vmatpush1.msra.mxu0 0.0
    %874 = vmatprep.subr.mxu0 0.0
    %875 = vmatpush1.msra.mxu0 0.0
    %876 = vmatprep.subr.mxu0 0.0
    %877 = vmatpush1.msra.mxu0 0.0
    %878 = vmatprep.subr.mxu0 0.0
    %879 = vmatpush1.msra.mxu0 0.0
    %880 = vmatprep.subr.mxu0 0.0
    %881 = vmatpush1.msra.mxu0 %v845
    %882 = vmatprep.subr.mxu0 0.0
    %883 = vmatpush2.msra.mxu0 0.0
    %884 = vmatprep.subr.mxu0 0.0
    %885 = vmatpush2.msra.mxu0 0.0
    %886 = vmatprep.subr.mxu0 0.0
    %887 = vmatpush2.msra.mxu0 0.0
    %888 = vmatprep.subr.mxu0 0.0
    %889 = vmatpush2.msra.mxu0 0.0
    %890 = vmatprep.subr.mxu0 0.0
    %891 = vmatpush2.msra.mxu0 0.0
    %892 = vmatprep.subr.mxu0 0.0
    %893 = vmatpush2.msra.mxu0 0.0
    %894 = vmatprep.subr.mxu0 0.0
    %895 = vmatpush2.msra.mxu0 0.0
    %896 = vmatprep.subr.mxu0 0.0
    %897 = vmatpush2.msra.mxu0 0.0
    %898 = vmatprep.subr.mxu0 0.0
    %899 = vmatpush2.msra.mxu0 0.0
    %900 = vmatprep.subr.mxu0 0.0
    %901 = vmatpush2.msra.mxu0 0.0
    %902 = vmatprep.subr.mxu0 0.0
    %903 = vmatpush2.msra.mxu0 0.0
    %904 = vmatprep.subr.mxu0 0.0
    %905 = vmatpush2.msra.mxu0 0.0
    %906 = vmatprep.subr.mxu0 0.0
    %907 = vmatpush2.msra.mxu0 0.0
    %908 = vmatprep.subr.mxu0 0.0
    %909 = vmatpush2.msra.mxu0 0.0
    %910 = vmatprep.subr.mxu0 0.0
    %911 = vmatpush2.msra.mxu0 0.0
    %912 = vmatprep.subr.mxu0 0.0
    %913 = vmatpush2.msra.mxu0 0.0
    %914 = vmatprep.mubr.f32.mxu0 0.0
    %915 = vmatmul.mubr.f32.gmra.mxu0 %v848
    %v916 = vpop.f32.mrf.mxu0
    %v917 = vadd.f32 0.0, %v916
    %v918 = vpop.f32.mrf.mxu0
    %919 = vdwg.mxu0
    %920 = vrot.lane.b32.xlu0 %v305, 96
    %v921 = vpop.permute.xlu0 %920
    %v924 = vsel %vm310, %v686, 0
    %926 = vmatprep.subr.mxu0 0.0
    %927 = vmatpush1.msra.mxu0 0.0
    %928 = vmatprep.subr.mxu0 0.0
    %929 = vmatpush1.msra.mxu0 0.0
    %930 = vmatprep.subr.mxu0 0.0
    %931 = vmatpush1.msra.mxu0 0.0
    %932 = vmatprep.subr.mxu0 0.0
    %933 = vmatpush1.msra.mxu0 0.0
    %934 = vmatprep.subr.mxu0 0.0
    %935 = vmatpush1.msra.mxu0 0.0
    %936 = vmatprep.subr.mxu0 0.0
    %937 = vmatpush1.msra.mxu0 0.0
    %938 = vmatprep.subr.mxu0 0.0
    %939 = vmatpush1.msra.mxu0 0.0
    %940 = vmatprep.subr.mxu0 0.0
    %941 = vmatpush1.msra.mxu0 0.0
    %942 = vmatprep.subr.mxu0 0.0
    %943 = vmatpush1.msra.mxu0 0.0
    %944 = vmatprep.subr.mxu0 0.0
    %945 = vmatpush1.msra.mxu0 0.0
    %946 = vmatprep.subr.mxu0 0.0
    %947 = vmatpush1.msra.mxu0 0.0
    %948 = vmatprep.subr.mxu0 0.0
    %949 = vmatpush1.msra.mxu0 0.0
    %950 = vmatprep.subr.mxu0 0.0
    %951 = vmatpush1.msra.mxu0 0.0
    %952 = vmatprep.subr.mxu0 0.0
    %953 = vmatpush1.msra.mxu0 0.0
    %954 = vmatprep.subr.mxu0 0.0
    %955 = vmatpush1.msra.mxu0 0.0
    %956 = vmatprep.subr.mxu0 0.0
    %957 = vmatpush1.msra.mxu0 %v921
    %958 = vmatprep.subr.mxu0 0.0
    %959 = vmatpush2.msra.mxu0 0.0
    %960 = vmatprep.subr.mxu0 0.0
    %961 = vmatpush2.msra.mxu0 0.0
    %962 = vmatprep.subr.mxu0 0.0
    %963 = vmatpush2.msra.mxu0 0.0
    %964 = vmatprep.subr.mxu0 0.0
    %965 = vmatpush2.msra.mxu0 0.0
    %966 = vmatprep.subr.mxu0 0.0
    %967 = vmatpush2.msra.mxu0 0.0
    %968 = vmatprep.subr.mxu0 0.0
    %969 = vmatpush2.msra.mxu0 0.0
    %970 = vmatprep.subr.mxu0 0.0
    %971 = vmatpush2.msra.mxu0 0.0
    %972 = vmatprep.subr.mxu0 0.0
    %973 = vmatpush2.msra.mxu0 0.0
    %974 = vmatprep.subr.mxu0 0.0
    %975 = vmatpush2.msra.mxu0 0.0
    %976 = vmatprep.subr.mxu0 0.0
    %977 = vmatpush2.msra.mxu0 0.0
    %978 = vmatprep.subr.mxu0 0.0
    %979 = vmatpush2.msra.mxu0 0.0
    %980 = vmatprep.subr.mxu0 0.0
    %981 = vmatpush2.msra.mxu0 0.0
    %982 = vmatprep.subr.mxu0 0.0
    %983 = vmatpush2.msra.mxu0 0.0
    %984 = vmatprep.subr.mxu0 0.0
    %985 = vmatpush2.msra.mxu0 0.0
    %986 = vmatprep.subr.mxu0 0.0
    %987 = vmatpush2.msra.mxu0 0.0
    %988 = vmatprep.subr.mxu0 0.0
    %989 = vmatpush2.msra.mxu0 0.0
    %990 = vmatprep.mubr.f32.mxu0 0.0
    %991 = vmatmul.mubr.f32.gmra.mxu0 %v924
    %v992 = vpop.f32.mrf.mxu0
    %v993 = vadd.f32 0.0, %v992
    %v994 = vpop.f32.mrf.mxu0
    %995 = vdwg.mxu0
    %v996 = vadd.f32 %v687, %v765
    %v997 = vadd.f32 %v688, %v841
    %v998 = vadd.f32 %v689, %v917
    %v999 = vadd.f32 %v690, %v993
    %1000 = vst.msk [vmem:[#allocation3] sm:$0xff] %vm310, %v996
    %1001 = vst.msk [vmem:[#allocation3 + $0x8] sm:$0xff] %vm310, %v997
    %1002 = vst.msk [vmem:[#allocation3 + $0x10] sm:$0xff] %vm310, %v998
    %1003 = vst.msk [vmem:[#allocation3 + $0x18] sm:$0xff] %vm310, %v999
    // Predicated region
    $region46: #{tpu_custom_call.1} parent=1 // pred_check
      %p1004 = pneg %p66
    $region47: #{tpu_custom_call.1} parent=1 // pred_check_branch
      %1006 = sbr.rel (%p1004) target = $region49
    $region48: #{tpu_custom_call.1} parent=1 // pred_region
      %v1007 = vld [vmem:[#allocation3] sm:$0xff]
      %s1008 = scalar_lea.vmem [#allocation3], 8
      %v1009 = vld [vmem:[%s1008] sm:$0xff]
      %s1010 = scalar_lea.vmem [#allocation3], 16
      %v1011 = vld [vmem:[%s1010] sm:$0xff]
      %s1012 = scalar_lea.vmem [#allocation3], 24
      %v1013 = vld [vmem:[%s1012] sm:$0xff]
      %1015 = vrot.lane.b32.xlu0 %v1009, 8
      %v1016 = vpop.permute.xlu0 %1015
      %1019 = vrot.lane.b32.xlu0 %v1011, 16
      %v1020 = vpop.permute.xlu0 %1019
      %1023 = vrot.lane.b32.xlu0 %v1013, 24
      %v1024 = vpop.permute.xlu0 %1023
      %v1026 = vsel %vm310, %v1007, %v1016
      %vm1027 = vcmask 130048
      %v1028 = vsel %vm1027, %v1026, %v1020
      %vm1029 = vcmask 195584
      %v1030 = vsel %vm1029, %v1028, %v1024
      %v1031 = vsel %vm189, %v1030, 0.0
      %1032 = vadd.xlane.f32.xlu0 %v1031
      %v1033 = vpop.xlane.xlu0 %1032
      %v1034 = vrcp.pop 32.0
      %v1035 = vmul.f32 %v1033, %v1034
      %v1036 = vsub.f32 %v1030, %v1035
      %v1037 = vmul.f32 %v1036, %v1036
      %v1038 = vsel %vm189, %v1037, 0.0
      %1039 = vadd.xlane.f32.xlu0 %v1038
      %v1040 = vpop.xlane.xlu0 %1039
      %v1041 = vmul.f32 %v1040, %v1034
      %v1042 = vadd.f32 %v1041, 0.001
      %v1043 = vrsqrt.pop %v1042
      %v1044 = vmul.f32 %v1036, %v1043
      %v1045 = vld [vmem:[%s5] sm:$0x1]
      %v1047 = vlaneseq
      %v1048 = vshrl.u32 %v1047, 7
      %v1049 = vsub.s32 0, %v1048
      %v1050 = vrot.slane %v1045, %v1049
      %v1052 = vmul.f32 %v1044, %v1050
      %v1053 = vld [vmem:[%s6] sm:$0x1]
      %v1055 = vlaneseq
      %v1056 = vshrl.u32 %v1055, 7
      %v1057 = vsub.s32 0, %v1056
      %v1058 = vrot.slane %v1053, %v1057
      %v1060 = vadd.f32 %v1052, %v1058
      %1061 = vst.msk [vmem:[#allocation10] sm:$0xff] %vm189, %v1060
    $region49: #{tpu_custom_call.1} parent=1 // pred_fallthru
      _
    // Predicated region
    $region50: #{tpu_custom_call.1} parent=1 // pred_check
      _
    $region51: #{tpu_custom_call.1} parent=1 // pred_check_branch
      %1063 = sbr.rel (0) target = $region53
    $region52: #{tpu_custom_call.1} parent=1 // pred_region
      %s1065 = ssub.s32 128, 128
      %1066 = vsyncadd [#allocation6], %s1065
      %s1068 = sshll.u32 [#allocation10], 4
      %s1069 = int_to_ptr.vmem [resolvable:$true] %s1068
      %1071 = dma.vmem_to_hbm [thread:$0]  %s1069, 128, %s7, [#allocation6]
    $region53: #{tpu_custom_call.1} parent=1 // pred_fallthru
      _
    // Predicated region
    $region54: #{tpu_custom_call.1} parent=1 // pred_check
      _
    $region55: #{tpu_custom_call.1} parent=1 // pred_check_branch
      %1073 = sbr.rel (0) target = $region57
    $region56: #{tpu_custom_call.1} parent=1 // pred_region
      %1074 = dma.done [#allocation6], 128
    $region57: #{tpu_custom_call.1} parent=1 // pred_fallthru
      _
    %1075 = vsyncpa [#allocation5], 1
    %1076 = vsyncpa [#allocation8], 1
    %1077 = vsyncpa [#allocation6], 1

</llo_original>
